<compile_context>
chip_gen: v7x
topology: tpu7x:2x2x1
jax: 0.10.0
libtpu: 0.0.40
codegen_flags: <defaults>
</compile_context>

<pallas_src>
import warnings

import jax
import jax.numpy as jnp
import numpy as np
from jax.experimental import pallas as pl
from jax.experimental.pallas import tpu as pltpu

LANE = 128


def _round_up(v, m):
    return (v + m - 1) // m * m


# ----------------------------------------------------------------------------
# Kernels
# ----------------------------------------------------------------------------
def _mlp_kernel_resident(x_ref, w1_ref, b1_ref, w2_ref, b2_ref, o_ref):
    # x_ref : (tb, IN_p)      w1_ref: (IN_p, HID_p)   b1_ref: (1, HID_p) f32
    # w2_ref: (HID_p, OUT_p)  b2_ref: (1, OUT_p) f32  o_ref : (tb, OUT_p)
    h = jnp.dot(x_ref[...], w1_ref[...], preferred_element_type=jnp.float32)
    h = jnp.maximum(h + b1_ref[...], 0.0)  # bias + ReLU epilogue stays f32 (VPU)
    # NOTE: casting h to the MXU operand dtype (bf16 fast path) trades ~1e-2 rel.
    # error for 2x matmul throughput; keep weights f32 if accuracy matters.
    out = jnp.dot(h.astype(w2_ref.dtype), w2_ref[...],
                  preferred_element_type=jnp.float32)
    o_ref[...] = (out + b2_ref[...]).astype(o_ref.dtype)


def _mlp_kernel_hid_tiled(x_ref, w1_ref, b1_ref, w2_ref, b2_ref, o_ref, acc_ref):
    # Reduction over HID tiles (grid axis 1, "arbitrary"): per hid-chunk compute
    # relu(x @ W1[:, j] + b1[j]) @ W2[j, :] and accumulate in f32 VMEM scratch.
    j = pl.program_id(1)

    @pl.when(j == 0)
    def _():
        acc_ref[...] = jnp.zeros_like(acc_ref)

    h = jnp.dot(x_ref[...], w1_ref[...], preferred_element_type=jnp.float32)
    h = jnp.maximum(h + b1_ref[...], 0.0)
    acc_ref[...] += jnp.dot(h.astype(w2_ref.dtype), w2_ref[...],
                            preferred_element_type=jnp.float32)

    @pl.when(j == pl.num_programs(1) - 1)
    def _():
        o_ref[...] = (acc_ref[...] + b2_ref[...]).astype(o_ref.dtype)


# ----------------------------------------------------------------------------
# Helpers
# ----------------------------------------------------------------------------
_SINGLE_BUFFER_OK = None


def _probe_copy_kernel(x_ref, o_ref):
    o_ref[...] = x_ref[...]


def _single_buffer_supported():
    """Feature-detect pl.Buffered(1) once with a tiny probe kernel.

    Confines the defensive `except` to a trivial probe (per review), so the real
    kernel's buffering config is deterministic and any genuine lowering error in
    the real kernel surfaces instead of being masked.
    """
    global _SINGLE_BUFFER_OK
    if _SINGLE_BUFFER_OK is None:
        try:
            fn = pl.pallas_call(
                _probe_copy_kernel,
                out_shape=jax.ShapeDtypeStruct((8, 128), jnp.float32),
                grid=(1,),
                in_specs=[pl.BlockSpec((8, 128), lambda i: (0, 0),
                                       pipeline_mode=pl.Buffered(1))],
                out_specs=pl.BlockSpec((8, 128), lambda i: (0, 0)),
            )
            jax.block_until_ready(fn(jnp.zeros((8, 128), jnp.float32)))
            _SINGLE_BUFFER_OK = True
        except Exception:  # noqa: BLE001  (probe only)
            warnings.warn("pl.Buffered(1) not supported by this Pallas build; "
                          "grid-invariant operands will be double-buffered.")
            _SINGLE_BUFFER_OK = False
    return _SINGLE_BUFFER_OK


def _vmem_budget_bytes():
    """Generation-aware VMEM budget: ~75% of physical VMEM (v5e/v6e 128 MiB, v7x 64 MiB)."""
    try:
        cap = int(pltpu.get_tpu_info().vmem_capacity_bytes)
    except Exception:  # pragma: no cover - conservative fallback (v7x per-TC size)
        cap = 64 << 20
    return max(48 << 20, int(cap * 0.75))


def _choose_batch_tile(b8):
    """Batch tile: multiple of 8, <=256 rows, aiming for >=4 grid steps when B permits
    (2 steps per TensorCore on dual-TC v7x) so DMA/compute pipelining is never starved."""
    if b8 <= 16:
        return b8
    target_steps = 4 if b8 >= 64 else 2
    tb = _round_up(pl.cdiv(b8, target_steps), 8)
    return max(8, min(tb, 256))


def _choose_hid_tile(HID_p, IN_p, OUT_p, esz, slice_budget):
    """Largest multiple-of-128 divisor of HID_p whose (double-buffered) weight slices
    fit slice_budget. Worst case 128 (always divides HID_p)."""
    n128 = HID_p // LANE
    best = LANE
    for d in range(1, n128 + 1):
        if n128 % d:
            continue
        thid = LANE * d
        if 2 * (IN_p * thid + thid * OUT_p) * esz <= slice_budget:
            best = thid
    return best


# ----------------------------------------------------------------------------
# Public API
# ----------------------------------------------------------------------------
def prepare_mlp_params(w1, b1, w2, b2, *, mxu_dtype=None):
    """Pad/cast the MLP parameters ONCE (hoisted out of the per-call path).

    w1: (IN, HID), w2: (HID, OUT) (pre-transposed vs. nn.Linear.weight).
    mxu_dtype: optional matmul operand dtype (e.g. jnp.bfloat16 — valid on
    v5e/v6e/v7x; accumulation and the bias/ReLU epilogue stay float32).
    """
    IN, HID = w1.shape
    HID2, OUT = w2.shape
    assert HID2 == HID and b1.reshape(-1).shape[0] == HID and b2.reshape(-1).shape[0] == OUT
    op_dtype = jnp.dtype(mxu_dtype) if mxu_dtype is not None else jnp.dtype(w1.dtype)

    # TODO(synk): for very large, compute-bound HID/OUT on v6e/v7x consider padding
    # to multiples of 256 (2x256^2 MXU) instead of 128.
    IN_p, HID_p, OUT_p = (_round_up(d, LANE) for d in (IN, HID, OUT))

    w1p = jnp.zeros((IN_p, HID_p), op_dtype).at[:IN, :HID].set(w1.astype(op_dtype))
    w2p = jnp.zeros((HID_p, OUT_p), op_dtype).at[:HID, :OUT].set(w2.astype(op_dtype))
    b1p = jnp.zeros((1, HID_p), jnp.float32).at[0, :HID].set(
        b1.astype(jnp.float32).reshape(HID))
    b2p = jnp.zeros((1, OUT_p), jnp.float32).at[0, :OUT].set(
        b2.astype(jnp.float32).reshape(OUT))
    return dict(w1p=w1p, b1p=b1p, w2p=w2p, b2p=b2p,
                IN=IN, HID=HID, OUT=OUT, IN_p=IN_p, HID_p=HID_p, OUT_p=OUT_p,
                op_dtype=op_dtype)


def mlp_forward(x, params, *, tb=None, force_hid_tile=None, interpret=False):
    """Fused MLP forward: relu(x @ w1 + b1) @ w2 + b2, with params from prepare_mlp_params."""
    p = params
    IN, OUT = p["IN"], p["OUT"]
    IN_p, HID_p, OUT_p = p["IN_p"], p["HID_p"], p["OUT_p"]
    op_dtype = p["op_dtype"]

    orig_shape = x.shape
    assert orig_shape[-1] == IN
    out_dtype = x.dtype                      # kernel writes output in the input dtype
    x2 = x.reshape(-1, IN)
    B = x2.shape[0]
    if x2.dtype != op_dtype:
        x2 = x2.astype(op_dtype)

    # Lane-pad x to IN_p (pad values are don't-care: W1 rows >= IN are zero) and
    # sublane-pad the batch to a multiple of 8 (<= 7 extra rows). Remaining
    # raggedness vs. tb is handled by Pallas' masked last block.
    B8 = _round_up(max(B, 1), 8)
    if B8 != B or IN_p != IN:
        x2 = jnp.pad(x2, ((0, B8 - B), (0, IN_p - IN)))

    if tb is None:
        tb = _choose_batch_tile(B8)
    tb = max(8, _round_up(min(int(tb), B8), 8))
    n_bt = pl.cdiv(B8, tb)
    rows = n_bt * tb                          # rows of MXU work actually issued

    esz = jnp.dtype(op_dtype).itemsize
    out_esz = jnp.dtype(out_dtype).itemsize
    budget = _vmem_budget_bytes()

    weight_bytes = (IN_p * HID_p + HID_p * OUT_p) * esz
    resident_est = (2 * tb * IN_p * esz           # x tiles (double-buffered)
                    + 2 * tb * OUT_p * out_esz    # out tiles (double-buffered)
                    + weight_bytes                # single-buffered resident weights
                    + (HID_p + OUT_p) * 4         # biases
                    + tb * HID_p * (4 + esz))     # f32 h + cast copy
    use_hid_tile = (force_hid_tile is not None) or (resident_est > budget)

    cost = pl.CostEstimate(
        flops=int(2 * rows * (IN_p * HID_p + HID_p * OUT_p)),
        transcendentals=0,
        bytes_accessed=int(rows * IN_p * esz + weight_bytes
                           + (HID_p + OUT_p) * 4 + rows * OUT_p * out_esz))

    # Grid-invariant operands single-buffered (constant index_map), if supported.
    wmode = {"pipeline_mode": pl.Buffered(1)} if _single_buffer_supported() else {}
    args = (x2, p["w1p"], p["b1p"], p["w2p"], p["b2p"])

    if not use_hid_tile:
        # Weights-resident path (fits VMEM on this generation).
        vmem_limit = int(min(max(1.3 * resident_est + (4 << 20), 32 << 20), budget))
        # TODO(synk): once the grid has >=4 steps and IN_p is large, sweep
        # pipeline_mode=pl.Buffered(3) on the x-tile spec.
        out_p = pl.pallas_call(
            _mlp_kernel_resident,
            out_shape=jax.ShapeDtypeStruct((B8, OUT_p), out_dtype),
            grid_spec=pltpu.PrefetchScalarGridSpec(
                num_scalar_prefetch=0,
                grid=(n_bt,),
                in_specs=[
                    pl.BlockSpec((tb, IN_p), lambda i: (i, 0)),
                    pl.BlockSpec((IN_p, HID_p), lambda i: (0, 0), **wmode),
                    pl.BlockSpec((1, HID_p), lambda i: (0, 0), **wmode),
                    pl.BlockSpec((HID_p, OUT_p), lambda i: (0, 0), **wmode),
                    pl.BlockSpec((1, OUT_p), lambda i: (0, 0), **wmode),
                ],
                out_specs=pl.BlockSpec((tb, OUT_p), lambda i: (i, 0)),
            ),
            compiler_params=pltpu.CompilerParams(
                dimension_semantics=("parallel",),
                vmem_limit_bytes=vmem_limit),
            cost_estimate=cost,
            interpret=interpret,
        )(*args)
    else:
        # Weights too large for VMEM (e.g. v7x 64 MiB/TC): tile the HID axis as a
        # reduction with an f32 accumulator (pl.when init/finalize).
        if force_hid_tile is not None:
            thid = int(force_hid_tile)
            assert thid % LANE == 0 and HID_p % thid == 0
        else:
            thid = _choose_hid_tile(HID_p, IN_p, OUT_p, esz,
                                    slice_budget=max(budget // 3, 8 << 20))
        # TODO(synk): additionally tile IN (K of matmul 1) / OUT (N of matmul 2)
        # for layers so large that even thid=128 slices exceed VMEM.
        n_ht = HID_p // thid
        tiled_est = (2 * tb * IN_p * esz
                     + 2 * tb * OUT_p * out_esz
                     + 2 * (IN_p * thid + thid * OUT_p) * esz   # W slices, double-buffered
                     + 2 * thid * 4 + OUT_p * 4                 # bias slices
                     + tb * OUT_p * 4                           # accumulator scratch
                     + tb * thid * (4 + esz))                   # f32 h + cast copy
        vmem_limit = int(min(max(1.3 * tiled_est + (4 << 20), 32 << 20), budget))
        out_p = pl.pallas_call(
            _mlp_kernel_hid_tiled,
            out_shape=jax.ShapeDtypeStruct((B8, OUT_p), out_dtype),
            grid_spec=pltpu.PrefetchScalarGridSpec(
                num_scalar_prefetch=0,
                grid=(n_bt, n_ht),
                in_specs=[
                    pl.BlockSpec((tb, IN_p), lambda i, j: (i, 0)),
                    pl.BlockSpec((IN_p, thid), lambda i, j: (0, j)),
                    pl.BlockSpec((1, thid), lambda i, j: (0, j)),
                    pl.BlockSpec((thid, OUT_p), lambda i, j: (j, 0)),
                    pl.BlockSpec((1, OUT_p), lambda i, j: (0, 0), **wmode),
                ],
                out_specs=pl.BlockSpec((tb, OUT_p), lambda i, j: (i, 0)),
                scratch_shapes=[pltpu.VMEM((tb, OUT_p), jnp.float32)],
            ),
            compiler_params=pltpu.CompilerParams(
                dimension_semantics=("parallel", "arbitrary"),
                vmem_limit_bytes=vmem_limit),
            cost_estimate=cost,
            interpret=interpret,
        )(*args)

    out = out_p
    if B8 != B or OUT_p != OUT:
        out = out[:B, :OUT]
    return out.reshape(*orig_shape[:-1], OUT)


def init_linear_params(key, in_features, out_features):
    """nn.Linear-style init: U(-1/sqrt(in), 1/sqrt(in)).
    Weight returned pre-transposed as (in, out); bias (out,)."""
    kw, kb = jax.random.split(key)
    bound = 1.0 / np.sqrt(in_features)
    w = jax.random.uniform(kw, (in_features, out_features),
                           minval=-bound, maxval=bound, dtype=jnp.float32)
    b = jax.random.uniform(kb, (out_features,),
                           minval=-bound, maxval=bound, dtype=jnp.float32)
    return w, b


if __name__ == "__main__":
    # Small shapes consistent with the module: x_train features -> input_size,
    # c_train features -> output_size.
    batch = 8
    input_size = 16
    hidden_size = 32
    output_size = 4

    key = jax.random.PRNGKey(0)
    kx, k1, k2, k3, k4 = jax.random.split(key, 5)

    x = jax.random.normal(kx, (batch, input_size), dtype=jnp.float32)
    w1, b1 = init_linear_params(k1, input_size, hidden_size)
    w2, b2 = init_linear_params(k2, hidden_size, output_size)

    # Host float64 reference of the forward semantics (precision-independent).
    def np_ref(xv, w1v, b1v, w2v, b2v):
        xn = np.asarray(xv, np.float64)
        h = np.maximum(xn @ np.asarray(w1v, np.float64) + np.asarray(b1v, np.float64), 0.0)
        return h @ np.asarray(w2v, np.float64) + np.asarray(b2v, np.float64)

    ref = np_ref(x, w1, b1, w2, b2)

    # 1) f32 weights-resident path.
    params = prepare_mlp_params(w1, b1, w2, b2)          # pad/cast ONCE (hoisted)
    out = jax.block_until_ready(mlp_forward(x, params))
    np.testing.assert_allclose(np.asarray(out, np.float64), ref, rtol=1e-3, atol=1e-3)

    # 2) bf16 MXU-operand fast path (valid on v5e/v6e/v7x; f32 accumulate + epilogue).
    params_bf16 = prepare_mlp_params(w1, b1, w2, b2, mxu_dtype=jnp.bfloat16)
    out_bf16 = jax.block_until_ready(mlp_forward(x, params_bf16))
    np.testing.assert_allclose(np.asarray(out_bf16, np.float64), ref, rtol=6e-2, atol=6e-2)

    # 3) HID-tiled fallback path (weights not VMEM-resident, e.g. large layers on
    #    v7x), forced at small sizes so the code path is exercised here.
    hidden_big = 256
    w1b, b1b = init_linear_params(k3, input_size, hidden_big)
    w2b, b2b = init_linear_params(k4, hidden_big, output_size)
    refb = np_ref(x, w1b, b1b, w2b, b2b)
    params_big = prepare_mlp_params(w1b, b1b, w2b, b2b)
    out_big = jax.block_until_ready(mlp_forward(x, params_big, force_hid_tile=128))
    np.testing.assert_allclose(np.asarray(out_big, np.float64), refb, rtol=1e-3, atol=1e-3)

    print("KERNEL_OK")
</pallas_src>

<mosaic_0001>
module attributes {stable_mosaic.version = 11 : i64} {
  func.func @_probe_copy_kernel(%arg0: i32, %arg1: memref<8x128xf32, #tpu.memory_space<vmem>>, %arg2: memref<8x128xf32, #tpu.memory_space<vmem>>) attributes {dimension_semantics = [#tpu.dimension_semantics<arbitrary>], iteration_bounds = array<i64: 1>, scalar_prefetch = 0 : i64, scratch_operands = 0 : i64, tpu.core_type = #tpu.core_type<tc>, window_params = [{pipeline_mode = #tpu.pipeline_mode<synchronous>, transform_indices = @transform_0, window_bounds = array<i64: 8, 128>}, {pipeline_mode = #tpu.pipeline_mode<synchronous>, transform_indices = @transform_1, window_bounds = array<i64: 8, 128>}]} {
    %c0 = arith.constant 0 : index
    %c0_0 = arith.constant 0 : index
    %0 = vector.load %arg1[%c0, %c0_0] : memref<8x128xf32, #tpu.memory_space<vmem>>, vector<8x128xf32>
    %c0_1 = arith.constant 0 : index
    %c0_2 = arith.constant 0 : index
    %1 = vector.load %arg2[%c0_1, %c0_2] : memref<8x128xf32, #tpu.memory_space<vmem>>, vector<8x128xf32>
    tpu.vector_store %arg2[%c0_1, %c0_2], %0 {strides = array<i32>} : memref<8x128xf32, #tpu.memory_space<vmem>>, vector<8x128xf32>,
    return
  }
  func.func @transform_0(%arg0: i32) -> (i32, i32) {
    %c0_i32 = arith.constant 0 : i32
    %c0_i32_0 = arith.constant 0 : i32
    %c0_i32_1 = arith.constant 0 : i32
    return %c0_i32, %c0_i32_0 : i32, i32
  }
  func.func @transform_1(%arg0: i32) -> (i32, i32) {
    %c0_i32 = arith.constant 0 : i32
    %c0_i32_0 = arith.constant 0 : i32
    %c0_i32_1 = arith.constant 0 : i32
    return %c0_i32, %c0_i32_0 : i32, i32
  }
}

module attributes {stable_mosaic.version = 11 : i64} {
  func.func @_mlp_kernel_resident(%arg0: i32, %arg1: memref<8x128xf32, #tpu.memory_space<vmem>>, %arg2: memref<128x128xf32, #tpu.memory_space<vmem>>, %arg3: memref<1x128xf32, #tpu.memory_space<vmem>>, %arg4: memref<128x128xf32, #tpu.memory_space<vmem>>, %arg5: memref<1x128xf32, #tpu.memory_space<vmem>>, %arg6: memref<8x128xf32, #tpu.memory_space<vmem>>) attributes {dimension_semantics = [#tpu.dimension_semantics<parallel>], iteration_bounds = array<i64: 1>, scalar_prefetch = 0 : i64, scratch_operands = 0 : i64, tpu.core_type = #tpu.core_type<tc>, window_params = [{transform_indices = @transform_0, window_bounds = array<i64: 8, 128>}, {pipeline_mode = #tpu.pipeline_mode<synchronous>, transform_indices = @transform_1, window_bounds = array<i64: 128, 128>}, {pipeline_mode = #tpu.pipeline_mode<synchronous>, transform_indices = @transform_2, window_bounds = array<i64: 1, 128>}, {pipeline_mode = #tpu.pipeline_mode<synchronous>, transform_indices = @transform_3, window_bounds = array<i64: 128, 128>}, {pipeline_mode = #tpu.pipeline_mode<synchronous>, transform_indices = @transform_4, window_bounds = array<i64: 1, 128>}, {transform_indices = @transform_5, window_bounds = array<i64: 8, 128>}]} {
    %c0 = arith.constant 0 : index
    %c0_0 = arith.constant 0 : index
    %0 = vector.load %arg1[%c0, %c0_0] : memref<8x128xf32, #tpu.memory_space<vmem>>, vector<8x128xf32>
    %c0_1 = arith.constant 0 : index
    %c0_2 = arith.constant 0 : index
    %1 = vector.load %arg2[%c0_1, %c0_2] : memref<128x128xf32, #tpu.memory_space<vmem>>, vector<128x128xf32>
    %cst = arith.constant dense<0.000000e+00> : vector<8x128xf32>
    %2 = tpu.matmul %0, %1, %cst {dimension_numbers = #tpu.dot_dimension_numbers<[1], [0], [0], [1], [0, 0, 1, 1], [], []>} : vector<8x128xf32>, vector<128x128xf32>, vector<8x128xf32> -> vector<8x128xf32>
    %c0_3 = arith.constant 0 : index
    %c0_4 = arith.constant 0 : index
    %3 = vector.load %arg3[%c0_3, %c0_4] : memref<1x128xf32, #tpu.memory_space<vmem>>, vector<1x128xf32>
    %4 = vector.broadcast %3 : vector<1x128xf32> to vector<8x128xf32>
    %5 = arith.addf %2, %4 : vector<8x128xf32>
    %cst_5 = arith.constant 0.000000e+00 : f32
    %6 = vector.broadcast %cst_5 : f32 to vector<8x128xf32>
    %7 = arith.maximumf %5, %6 : vector<8x128xf32>
    %c0_6 = arith.constant 0 : index
    %c0_7 = arith.constant 0 : index
    %8 = vector.load %arg4[%c0_6, %c0_7] : memref<128x128xf32, #tpu.memory_space<vmem>>, vector<128x128xf32>
    %cst_8 = arith.constant dense<0.000000e+00> : vector<8x128xf32>
    %9 = tpu.matmul %7, %8, %cst_8 {dimension_numbers = #tpu.dot_dimension_numbers<[1], [0], [0], [1], [0, 0, 1, 1], [], []>} : vector<8x128xf32>, vector<128x128xf32>, vector<8x128xf32> -> vector<8x128xf32>
    %c0_9 = arith.constant 0 : index
    %c0_10 = arith.constant 0 : index
    %10 = vector.load %arg5[%c0_9, %c0_10] : memref<1x128xf32, #tpu.memory_space<vmem>>, vector<1x128xf32>
    %11 = vector.broadcast %10 : vector<1x128xf32> to vector<8x128xf32>
    %12 = arith.addf %9, %11 : vector<8x128xf32>
    %c0_11 = arith.constant 0 : index
    %c0_12 = arith.constant 0 : index
    %13 = vector.load %arg6[%c0_11, %c0_12] : memref<8x128xf32, #tpu.memory_space<vmem>>, vector<8x128xf32>
    tpu.vector_store %arg6[%c0_11, %c0_12], %12 {strides = array<i32>} : memref<8x128xf32, #tpu.memory_space<vmem>>, vector<8x128xf32>,
    return
  }
  func.func @transform_0(%arg0: i32) -> (i32, i32) {
    %c0_i32 = arith.constant 0 : i32
    %c0_i32_0 = arith.constant 0 : i32
    return %arg0, %c0_i32 : i32, i32
  }
  func.func @transform_1(%arg0: i32) -> (i32, i32) {
    %c0_i32 = arith.constant 0 : i32
    %c0_i32_0 = arith.constant 0 : i32
    %c0_i32_1 = arith.constant 0 : i32
    return %c0_i32, %c0_i32_0 : i32, i32
  }
  func.func @transform_2(%arg0: i32) -> (i32, i32) {
    %c0_i32 = arith.constant 0 : i32
    %c0_i32_0 = arith.constant 0 : i32
    %c0_i32_1 = arith.constant 0 : i32
    return %c0_i32, %c0_i32_0 : i32, i32
  }
  func.func @transform_3(%arg0: i32) -> (i32, i32) {
    %c0_i32 = arith.constant 0 : i32
    %c0_i32_0 = arith.constant 0 : i32
    %c0_i32_1 = arith.constant 0 : i32
    return %c0_i32, %c0_i32_0 : i32, i32
  }
  func.func @transform_4(%arg0: i32) -> (i32, i32) {
    %c0_i32 = arith.constant 0 : i32
    %c0_i32_0 = arith.constant 0 : i32
    %c0_i32_1 = arith.constant 0 : i32
    return %c0_i32, %c0_i32_0 : i32, i32
  }
  func.func @transform_5(%arg0: i32) -> (i32, i32) {
    %c0_i32 = arith.constant 0 : i32
    %c0_i32_0 = arith.constant 0 : i32
    return %arg0, %c0_i32 : i32, i32
  }
}

</mosaic_0001>

<llo_original>
// kernel: tpu_custom_call.1
$region0: #{tpu_custom_call.1}
  #allocation0 [shape = 'u32[]', space=smem, size = 0x4, offset = 0x4, fixed_abs, tag = 'smem constant byte address 0x4 - core index']
  #allocation1 [shape = 'u32[144,128]{1,0:T(1,128)}', space=vmem, size = 0x12000, scoped, tag = 'internal scratch']
  %s0 = inlined_call_operand.hbm [shape: f32[8,128], index: 0, kind: input, shape index: {}]
  %s1 = inlined_call_operand.hbm [shape: f32[8,128], index: 1, kind: output, shape index: {}]
  %s2 = sld [smem:[#allocation0]]
  $region18: #{tpu_custom_call.1} parent=0
    _
  %s4 = ssub.s32 1, %s2
  %s5 = scalar_select 0, %s4, %s2
  $region1: #{tpu_custom_call.1} parent=0
    #allocation2 [shape = 'u8[4096]{0}', space=vmem, size = 0x1000, scoped, tag = 'input window, operand 0, single buffered']
    #allocation3 [shape = 's32[1]{0}', space=sflag, size = 0x4, scoped, tag = 'scoped memory for tpu_custom_call.1']
    #allocation4 [shape = 's32[1]{0}', space=sflag, size = 0x4, scoped, tag = 'scoped memory for tpu_custom_call.1']
    #allocation5 [shape = 'u8[4096]{0}', space=vmem, size = 0x1000, scoped, tag = 'output window, operand 0, single buffered']
    %6 = vsyncpa [#allocation3], 0
    %7 = vsyncpa [#allocation4], 0
    // Predicated region
    $region2: #{tpu_custom_call.1} parent=1 // pred_check
      _
    $region3: #{tpu_custom_call.1} parent=1 // pred_check_branch
      %9 = sbr.rel (0) target = $region5
    $region4: #{tpu_custom_call.1} parent=1 // pred_region
      %s11 = ssub.s32 128, 128
      %12 = vsyncadd [#allocation3], %s11
      %s14 = sshll.u32 [#allocation2], 4
      %s15 = int_to_ptr.vmem [resolvable:$true] %s14
      %17 = dma.hbm_to_vmem [thread:$0]  %s0, 128, %s15, [#allocation3]
    $region5: #{tpu_custom_call.1} parent=1 // pred_fallthru
      _
    // Predicated region
    $region6: #{tpu_custom_call.1} parent=1 // pred_check
      _
    $region7: #{tpu_custom_call.1} parent=1 // pred_check_branch
      %19 = sbr.rel (0) target = $region9
    $region8: #{tpu_custom_call.1} parent=1 // pred_region
      %20 = dma.done [#allocation3], 128
    $region9: #{tpu_custom_call.1} parent=1 // pred_fallthru
      _
    %v21 = vld [vmem:[#allocation2] sm:$0xff]
    %22 = vst [vmem:[#allocation5] sm:$0xff] %v21
    // Predicated region
    $region10: #{tpu_custom_call.1} parent=1 // pred_check
      _
    $region11: #{tpu_custom_call.1} parent=1 // pred_check_branch
      %24 = sbr.rel (0) target = $region13
    $region12: #{tpu_custom_call.1} parent=1 // pred_region
      %s26 = ssub.s32 128, 128
      %27 = vsyncadd [#allocation4], %s26
      %s29 = sshll.u32 [#allocation5], 4
      %s30 = int_to_ptr.vmem [resolvable:$true] %s29
      %32 = dma.vmem_to_hbm [thread:$0]  %s30, 128, %s1, [#allocation4]
    $region13: #{tpu_custom_call.1} parent=1 // pred_fallthru
      _
    // Predicated region
    $region14: #{tpu_custom_call.1} parent=1 // pred_check
      _
    $region15: #{tpu_custom_call.1} parent=1 // pred_check_branch
      %34 = sbr.rel (0) target = $region17
    $region16: #{tpu_custom_call.1} parent=1 // pred_region
      %35 = dma.done [#allocation4], 128
    $region17: #{tpu_custom_call.1} parent=1 // pred_fallthru
      _
    %36 = vsyncpa [#allocation3], 1
    %37 = vsyncpa [#allocation4], 1

// kernel: tpu_custom_call.1
$region0: #{tpu_custom_call.1}
  #allocation0 [shape = 'u32[]', space=smem, size = 0x4, offset = 0x4, fixed_abs, tag = 'smem constant byte address 0x4 - core index']
  #allocation1 [shape = 'u32[144,128]{1,0:T(1,128)}', space=vmem, size = 0x12000, scoped, tag = 'internal scratch']
  %s0 = inlined_call_operand.hbm [shape: f32[8,128], index: 0, kind: input, shape index: {}]
  %s1 = inlined_call_operand.hbm [shape: f32[128,128], index: 1, kind: input, shape index: {}]
  %s2 = inlined_call_operand.vmem [shape: f32[1,128], index: 2, kind: input, shape index: {}]
  %s3 = inlined_call_operand.hbm [shape: f32[128,128], index: 3, kind: input, shape index: {}]
  %s4 = inlined_call_operand.vmem [shape: f32[1,128], index: 4, kind: input, shape index: {}]
  %s5 = inlined_call_operand.hbm [shape: f32[8,128], index: 5, kind: output, shape index: {}]
  %s6 = sld [smem:[#allocation0]]
  $region42: #{tpu_custom_call.1} parent=0
    _
  %s8 = ssub.s32 1, %s6
  %s9 = scalar_select 0, %s8, %s6
  $region1: #{tpu_custom_call.1} parent=0
    #allocation2 [shape = 'u8[4096]{0}', space=vmem, size = 0x1000, scoped, tag = 'input window, operand 0, single buffered']
    #allocation3 [shape = 's32[1]{0}', space=sflag, size = 0x4, scoped, tag = 'scoped memory for tpu_custom_call.1']
    #allocation4 [shape = 's32[1]{0}', space=sflag, size = 0x4, scoped, tag = 'scoped memory for tpu_custom_call.1']
    #allocation5 [shape = 'u8[65536]{0}', space=vmem, size = 0x10000, scoped, tag = 'input window, operand 1, single buffered']
    #allocation6 [shape = 's32[1]{0}', space=sflag, size = 0x4, scoped, tag = 'scoped memory for tpu_custom_call.1']
    #allocation7 [shape = 'u8[65536]{0}', space=vmem, size = 0x10000, scoped, tag = 'input window, operand 3, single buffered']
    #allocation8 [shape = 'u8[4096]{0}', space=vmem, size = 0x1000, scoped, tag = 'output window, operand 0, single buffered']
    %10 = vsyncpa [#allocation3], 0
    %11 = vsyncpa [#allocation6], 0
    %12 = vsyncpa [#allocation4], 0
    // Predicated region
    $region2: #{tpu_custom_call.1} parent=1 // pred_check
      _
    $region3: #{tpu_custom_call.1} parent=1 // pred_check_branch
      %14 = sbr.rel (0) target = $region5
    $region4: #{tpu_custom_call.1} parent=1 // pred_region
      %s16 = ssub.s32 128, 128
      %17 = vsyncadd [#allocation3], %s16
      %s19 = sshll.u32 [#allocation2], 4
      %s20 = int_to_ptr.vmem [resolvable:$true] %s19
      %22 = dma.hbm_to_vmem [thread:$0]  %s0, 128, %s20, [#allocation3]
    $region5: #{tpu_custom_call.1} parent=1 // pred_fallthru
      _
    // Predicated region
    $region6: #{tpu_custom_call.1} parent=1 // pred_check
      _
    $region7: #{tpu_custom_call.1} parent=1 // pred_check_branch
      %24 = sbr.rel (0) target = $region9
    $region8: #{tpu_custom_call.1} parent=1 // pred_region
      %s26 = ssub.s32 2048, 2048
      %27 = vsyncadd [#allocation6], %s26
      %s28 = sshll.u32 [#allocation5], 4
      %s29 = int_to_ptr.vmem [resolvable:$true] %s28
      %34 = dma.hbm_to_vmem [thread:$0]  %s1, 2048, %s29, [#allocation6], 128, 128, 8
    $region9: #{tpu_custom_call.1} parent=1 // pred_fallthru
      _
    // Predicated region
    $region10: #{tpu_custom_call.1} parent=1 // pred_check
      _
    $region11: #{tpu_custom_call.1} parent=1 // pred_check_branch
      %36 = sbr.rel (0) target = $region13
    $region12: #{tpu_custom_call.1} parent=1 // pred_region
      _
    $region13: #{tpu_custom_call.1} parent=1 // pred_fallthru
      _
    // Predicated region
    $region14: #{tpu_custom_call.1} parent=1 // pred_check
      _
    $region15: #{tpu_custom_call.1} parent=1 // pred_check_branch
      %38 = sbr.rel (0) target = $region17
    $region16: #{tpu_custom_call.1} parent=1 // pred_region
      %s40 = ssub.s32 2048, 2048
      %41 = vsyncadd [#allocation6], %s40
      %s42 = sshll.u32 [#allocation7], 4
      %s43 = int_to_ptr.vmem [resolvable:$true] %s42
      %48 = dma.hbm_to_vmem [thread:$0]  %s3, 2048, %s43, [#allocation6], 128, 128, 8
    $region17: #{tpu_custom_call.1} parent=1 // pred_fallthru
      _
    // Predicated region
    $region18: #{tpu_custom_call.1} parent=1 // pred_check
      _
    $region19: #{tpu_custom_call.1} parent=1 // pred_check_branch
      %50 = sbr.rel (0) target = $region21
    $region20: #{tpu_custom_call.1} parent=1 // pred_region
      _
    $region21: #{tpu_custom_call.1} parent=1 // pred_fallthru
      _
    // Predicated region
    $region22: #{tpu_custom_call.1} parent=1 // pred_check
      _
    $region23: #{tpu_custom_call.1} parent=1 // pred_check_branch
      %52 = sbr.rel (0) target = $region25
    $region24: #{tpu_custom_call.1} parent=1 // pred_region
      %53 = dma.done [#allocation3], 128
    $region25: #{tpu_custom_call.1} parent=1 // pred_fallthru
      _
    // Predicated region
    $region26: #{tpu_custom_call.1} parent=1 // pred_check
      _
    $region27: #{tpu_custom_call.1} parent=1 // pred_check_branch
      %55 = sbr.rel (0) target = $region29
    $region28: #{tpu_custom_call.1} parent=1 // pred_region
      %56 = dma.done [#allocation6], 2048
    $region29: #{tpu_custom_call.1} parent=1 // pred_fallthru
      _
    // Predicated region
    $region30: #{tpu_custom_call.1} parent=1 // pred_check
      _
    $region31: #{tpu_custom_call.1} parent=1 // pred_check_branch
      %58 = sbr.rel (0) target = $region33
    $region32: #{tpu_custom_call.1} parent=1 // pred_region
      %59 = dma.done [#allocation6], 2048
    $region33: #{tpu_custom_call.1} parent=1 // pred_fallthru
      _
    %v60 = vld [vmem:[#allocation2] sm:$0xff]
    %v61 = vld [vmem:[#allocation5] sm:$0xff]
    %v62 = vld [vmem:[#allocation5 + $0x8] sm:$0xff]
    %v63 = vld [vmem:[#allocation5 + $0x10] sm:$0xff]
    %v64 = vld [vmem:[#allocation5 + $0x18] sm:$0xff]
    %v65 = vld [vmem:[#allocation5 + $0x20] sm:$0xff]
    %v66 = vld [vmem:[#allocation5 + $0x28] sm:$0xff]
    %v67 = vld [vmem:[#allocation5 + $0x30] sm:$0xff]
    %v68 = vld [vmem:[#allocation5 + $0x38] sm:$0xff]
    %v69 = vld [vmem:[#allocation5 + $0x40] sm:$0xff]
    %v70 = vld [vmem:[#allocation5 + $0x48] sm:$0xff]
    %v71 = vld [vmem:[#allocation5 + $0x50] sm:$0xff]
    %v72 = vld [vmem:[#allocation5 + $0x58] sm:$0xff]
    %v73 = vld [vmem:[#allocation5 + $0x60] sm:$0xff]
    %v74 = vld [vmem:[#allocation5 + $0x68] sm:$0xff]
    %v75 = vld [vmem:[#allocation5 + $0x70] sm:$0xff]
    %v76 = vld [vmem:[#allocation5 + $0x78] sm:$0xff]
    %v77 = vld [vmem:[%s2] sm:$0x1]
    %v79 = vlaneseq
    %v80 = vshrl.u32 %v79, 7
    %v81 = vsub.s32 0, %v80
    %v82 = vrot.slane %v77, %v81
    %84 = vmatprep.subr.mxu0 0.0
    %85 = vmatpush1.msra.mxu0 %v61
    %86 = vmatprep.subr.mxu0 0.0
    %87 = vmatpush1.msra.mxu0 %v62
    %88 = vmatprep.subr.mxu0 0.0
    %89 = vmatpush1.msra.mxu0 %v63
    %90 = vmatprep.subr.mxu0 0.0
    %91 = vmatpush1.msra.mxu0 %v64
    %92 = vmatprep.subr.mxu0 0.0
    %93 = vmatpush1.msra.mxu0 %v65
    %94 = vmatprep.subr.mxu0 0.0
    %95 = vmatpush1.msra.mxu0 %v66
    %96 = vmatprep.subr.mxu0 0.0
    %97 = vmatpush1.msra.mxu0 %v67
    %98 = vmatprep.subr.mxu0 0.0
    %99 = vmatpush1.msra.mxu0 %v68
    %100 = vmatprep.subr.mxu0 0.0
    %101 = vmatpush1.msra.mxu0 %v69
    %102 = vmatprep.subr.mxu0 0.0
    %103 = vmatpush1.msra.mxu0 %v70
    %104 = vmatprep.subr.mxu0 0.0
    %105 = vmatpush1.msra.mxu0 %v71
    %106 = vmatprep.subr.mxu0 0.0
    %107 = vmatpush1.msra.mxu0 %v72
    %108 = vmatprep.subr.mxu0 0.0
    %109 = vmatpush1.msra.mxu0 %v73
    %110 = vmatprep.subr.mxu0 0.0
    %111 = vmatpush1.msra.mxu0 %v74
    %112 = vmatprep.subr.mxu0 0.0
    %113 = vmatpush1.msra.mxu0 %v75
    %114 = vmatprep.subr.mxu0 0.0
    %115 = vmatpush1.msra.mxu0 %v76
    %116 = vmatprep.subr.mxu0 0.0
    %117 = vmatpush1.msra.mxu0 0.0
    %118 = vmatprep.subr.mxu0 0.0
    %119 = vmatpush1.msra.mxu0 0.0
    %120 = vmatprep.subr.mxu0 0.0
    %121 = vmatpush1.msra.mxu0 0.0
    %122 = vmatprep.subr.mxu0 0.0
    %123 = vmatpush1.msra.mxu0 0.0
    %124 = vmatprep.subr.mxu0 0.0
    %125 = vmatpush1.msra.mxu0 0.0
    %126 = vmatprep.subr.mxu0 0.0
    %127 = vmatpush1.msra.mxu0 0.0
    %128 = vmatprep.subr.mxu0 0.0
    %129 = vmatpush1.msra.mxu0 0.0
    %130 = vmatprep.subr.mxu0 0.0
    %131 = vmatpush1.msra.mxu0 0.0
    %132 = vmatprep.subr.mxu0 0.0
    %133 = vmatpush1.msra.mxu0 0.0
    %134 = vmatprep.subr.mxu0 0.0
    %135 = vmatpush1.msra.mxu0 0.0
    %136 = vmatprep.subr.mxu0 0.0
    %137 = vmatpush1.msra.mxu0 0.0
    %138 = vmatprep.subr.mxu0 0.0
    %139 = vmatpush1.msra.mxu0 0.0
    %140 = vmatprep.subr.mxu0 0.0
    %141 = vmatpush1.msra.mxu0 0.0
    %142 = vmatprep.subr.mxu0 0.0
    %143 = vmatpush1.msra.mxu0 0.0
    %144 = vmatprep.subr.mxu0 0.0
    %145 = vmatpush1.msra.mxu0 0.0
    %146 = vmatprep.subr.mxu0 0.0
    %147 = vmatpush1.msra.mxu0 0.0
    %148 = vmatprep.mubr.f32.mxu0 0.0
    %149 = vmatmul.mubr.f32.gmra.mrb[0].mxu0 %v60
    %v150 = vpop.f32.mrb[0].mxu0
    %v151 = vadd.f32 %v82, %v150
    %v152 = vpop.f32.mrb[0].mxu0
    %153 = vdwg.mxu0
    %v154 = vmax.f32 %v151, 0.0
    %v155 = vld [vmem:[#allocation7] sm:$0xff]
    %v156 = vld [vmem:[#allocation7 + $0x8] sm:$0xff]
    %v157 = vld [vmem:[#allocation7 + $0x10] sm:$0xff]
    %v158 = vld [vmem:[#allocation7 + $0x18] sm:$0xff]
    %v159 = vld [vmem:[#allocation7 + $0x20] sm:$0xff]
    %v160 = vld [vmem:[#allocation7 + $0x28] sm:$0xff]
    %v161 = vld [vmem:[#allocation7 + $0x30] sm:$0xff]
    %v162 = vld [vmem:[#allocation7 + $0x38] sm:$0xff]
    %v163 = vld [vmem:[#allocation7 + $0x40] sm:$0xff]
    %v164 = vld [vmem:[#allocation7 + $0x48] sm:$0xff]
    %v165 = vld [vmem:[#allocation7 + $0x50] sm:$0xff]
    %v166 = vld [vmem:[#allocation7 + $0x58] sm:$0xff]
    %v167 = vld [vmem:[#allocation7 + $0x60] sm:$0xff]
    %v168 = vld [vmem:[#allocation7 + $0x68] sm:$0xff]
    %v169 = vld [vmem:[#allocation7 + $0x70] sm:$0xff]
    %v170 = vld [vmem:[#allocation7 + $0x78] sm:$0xff]
    %v171 = vld [vmem:[%s4] sm:$0x1]
    %v173 = vlaneseq
    %v174 = vshrl.u32 %v173, 7
    %v175 = vsub.s32 0, %v174
    %v176 = vrot.slane %v171, %v175
    %178 = vmatprep.subr.mxu0 0.0
    %179 = vmatpush1.msra.mxu0 %v155
    %180 = vmatprep.subr.mxu0 0.0
    %181 = vmatpush1.msra.mxu0 %v156
    %182 = vmatprep.subr.mxu0 0.0
    %183 = vmatpush1.msra.mxu0 %v157
    %184 = vmatprep.subr.mxu0 0.0
    %185 = vmatpush1.msra.mxu0 %v158
    %186 = vmatprep.subr.mxu0 0.0
    %187 = vmatpush1.msra.mxu0 %v159
    %188 = vmatprep.subr.mxu0 0.0
    %189 = vmatpush1.msra.mxu0 %v160
    %190 = vmatprep.subr.mxu0 0.0
    %191 = vmatpush1.msra.mxu0 %v161
    %192 = vmatprep.subr.mxu0 0.0
    %193 = vmatpush1.msra.mxu0 %v162
    %194 = vmatprep.subr.mxu0 0.0
    %195 = vmatpush1.msra.mxu0 %v163
    %196 = vmatprep.subr.mxu0 0.0
    %197 = vmatpush1.msra.mxu0 %v164
    %198 = vmatprep.subr.mxu0 0.0
    %199 = vmatpush1.msra.mxu0 %v165
    %200 = vmatprep.subr.mxu0 0.0
    %201 = vmatpush1.msra.mxu0 %v166
    %202 = vmatprep.subr.mxu0 0.0
    %203 = vmatpush1.msra.mxu0 %v167
    %204 = vmatprep.subr.mxu0 0.0
    %205 = vmatpush1.msra.mxu0 %v168
    %206 = vmatprep.subr.mxu0 0.0
    %207 = vmatpush1.msra.mxu0 %v169
    %208 = vmatprep.subr.mxu0 0.0
    %209 = vmatpush1.msra.mxu0 %v170
    %210 = vmatprep.subr.mxu0 0.0
    %211 = vmatpush1.msra.mxu0 0.0
    %212 = vmatprep.subr.mxu0 0.0
    %213 = vmatpush1.msra.mxu0 0.0
    %214 = vmatprep.subr.mxu0 0.0
    %215 = vmatpush1.msra.mxu0 0.0
    %216 = vmatprep.subr.mxu0 0.0
    %217 = vmatpush1.msra.mxu0 0.0
    %218 = vmatprep.subr.mxu0 0.0
    %219 = vmatpush1.msra.mxu0 0.0
    %220 = vmatprep.subr.mxu0 0.0
    %221 = vmatpush1.msra.mxu0 0.0
    %222 = vmatprep.subr.mxu0 0.0
    %223 = vmatpush1.msra.mxu0 0.0
    %224 = vmatprep.subr.mxu0 0.0
    %225 = vmatpush1.msra.mxu0 0.0
    %226 = vmatprep.subr.mxu0 0.0
    %227 = vmatpush1.msra.mxu0 0.0
    %228 = vmatprep.subr.mxu0 0.0
    %229 = vmatpush1.msra.mxu0 0.0
    %230 = vmatprep.subr.mxu0 0.0
    %231 = vmatpush1.msra.mxu0 0.0
    %232 = vmatprep.subr.mxu0 0.0
    %233 = vmatpush1.msra.mxu0 0.0
    %234 = vmatprep.subr.mxu0 0.0
    %235 = vmatpush1.msra.mxu0 0.0
    %236 = vmatprep.subr.mxu0 0.0
    %237 = vmatpush1.msra.mxu0 0.0
    %238 = vmatprep.subr.mxu0 0.0
    %239 = vmatpush1.msra.mxu0 0.0
    %240 = vmatprep.subr.mxu0 0.0
    %241 = vmatpush1.msra.mxu0 0.0
    %242 = vmatprep.mubr.f32.mxu0 0.0
    %243 = vmatmul.mubr.f32.gmra.mrb[0].mxu0 %v154
    %v244 = vpop.f32.mrb[0].mxu0
    %v245 = vadd.f32 %v176, %v244
    %v246 = vpop.f32.mrb[0].mxu0
    %247 = vdwg.mxu0
    %248 = vst [vmem:[#allocation8] sm:$0xff] %v245
    // Predicated region
    $region34: #{tpu_custom_call.1} parent=1 // pred_check
      _
    $region35: #{tpu_custom_call.1} parent=1 // pred_check_branch
      %250 = sbr.rel (0) target = $region37
    $region36: #{tpu_custom_call.1} parent=1 // pred_region
      %s252 = ssub.s32 128, 128
      %253 = vsyncadd [#allocation4], %s252
      %s255 = sshll.u32 [#allocation8], 4
      %s256 = int_to_ptr.vmem [resolvable:$true] %s255
      %258 = dma.vmem_to_hbm [thread:$0]  %s256, 128, %s5, [#allocation4]
    $region37: #{tpu_custom_call.1} parent=1 // pred_fallthru
      _
    // Predicated region
    $region38: #{tpu_custom_call.1} parent=1 // pred_check
      _
    $region39: #{tpu_custom_call.1} parent=1 // pred_check_branch
      %260 = sbr.rel (0) target = $region41
    $region40: #{tpu_custom_call.1} parent=1 // pred_region
      %261 = dma.done [#allocation4], 128
    $region41: #{tpu_custom_call.1} parent=1 // pred_fallthru
      _
    %262 = vsyncpa [#allocation3], 1
    %263 = vsyncpa [#allocation6], 1
    %264 = vsyncpa [#allocation4], 1

</llo_original>
